<compile_context>
chip_gen: v5e
topology: v5e:2x2
jax: 0.10.0
libtpu: 0.0.40
codegen_flags: <defaults>
</compile_context>

<pallas_src>
import functools

import jax
import jax.numpy as jnp
from jax.experimental import pallas as pl
from jax.experimental.pallas import tpu as pltpu
from jax.scipy.special import erf as _erf_exact

HIDDEN = 50                      # hidden width of the nn.Sequential MLP
_SQRT_HALF = 0.7071067811865476
_GELU_C0 = 0.7978845608028654    # sqrt(2/pi)
_GELU_C1 = 0.044715


def _gelu(x):
    # tanh-form GELU: small VPU polynomial + one EUP tanh (EUP slot is otherwise idle).
    return 0.5 * x * (1.0 + jnp.tanh(_GELU_C0 * (x + _GELU_C1 * x * x * x)))


def _round_up(x, m):
    return ((x + m - 1) // m) * m


def _pick_batch_tile(batch, block_batch):
    """Batch tile: full extent, or a lane-aligned (multiple-of-128) block.

    For large single-tile batches, split into >= 2 tiles so v7x's two TensorCores can
    both work the "parallel" grid axis (harmless elsewhere)."""
    if batch <= block_batch:
        if batch >= 2048:
            tb = _round_up(pl.cdiv(batch, 2), 128)
            if tb < batch:
                return tb
        return batch                       # full-extent block is always legal
    return max(128, (block_batch // 128) * 128)


def _flexible_absorbing_kernel(data_ref, sel_ref, w1p_ref, b1_ref, w2_ref, b2_ref,
                               w3t_ref, b3_ref, out_ref, *, absorbing_val):
    data = data_ref[...]                                    # (TB, feat), native dtype

    # Layers 1 & 2 (MXU matmuls, f32 accumulation) + tanh-GELU.
    h = jnp.dot(data, w1p_ref[...], preferred_element_type=jnp.float32) + b1_ref[...]
    h = _gelu(h)
    h = jnp.dot(h, w2_ref[...], preferred_element_type=jnp.float32) + b2_ref[...]
    h = _gelu(h)

    # Layer 3 + flag extraction, computed directly in the lane-dense (1, TB) layout by
    # contracting the LAST dims of both operands ("a @ b.T" MXU form).
    dn = (((1,), (1,)), ((), ()))
    o_row = jax.lax.dot_general(w3t_ref[...], h, dn,
                                preferred_element_type=jnp.float32) + b3_ref[...]
    # One-hot row picks the flag column exactly (1.0 * flag + sum of zeros).
    flag_row = jax.lax.dot_general(sel_ref[...], data, dn,
                                   preferred_element_type=jnp.float32)

    out = jnp.where(flag_row != 0.0, absorbing_val, o_row)  # exact on flagged rows
    out_ref[...] = out.astype(out_ref.dtype)


class FlexibleAbsorbingNetPallas:
    """JAX/Pallas port of FlexibleAbsorbingNet (3-layer MLP + absorbing-state blend)."""

    def __init__(self, x_len, a_len, num_a, absorbing_val, *, key,
                 dtype=jnp.float32, block_batch=4096):
        self.x_len = int(x_len)
        self.a_len = int(a_len)
        self.num_a = int(num_a)            # stored for parity with AbstractNet
        self.absorbing_val = float(absorbing_val)
        self.block_batch = int(block_batch)
        self.dtype = dtype

        feat = self.x_len + self.a_len
        d_in = feat - 1

        def linear_init(k, fan_in, fan_out):
            # Mirrors nn.Linear default init: U(-1/sqrt(fan_in), 1/sqrt(fan_in)).
            kw, kb = jax.random.split(k)
            bound = 1.0 / (fan_in ** 0.5)
            w = jax.random.uniform(kw, (fan_in, fan_out), dtype, -bound, bound)
            b = jax.random.uniform(kb, (1, fan_out), dtype, -bound, bound)
            return w, b

        k1, k2, k3 = jax.random.split(key, 3)
        self.w1, self.b1 = linear_init(k1, d_in, HIDDEN)
        self.w2, self.b2 = linear_init(k2, HIDDEN, HIDDEN)
        self.w3, self.b3 = linear_init(k3, HIDDEN, 1)

        # One-time weight prep: embed W1 into the data layout with a zero row at the
        # flag column so the kernel needs no lane-axis concat.
        self.w1p = (jnp.zeros((feat, HIDDEN), dtype)
                    .at[: self.x_len - 1].set(self.w1[: self.x_len - 1])
                    .at[self.x_len:].set(self.w1[self.x_len - 1:]))
        # Transposed head weight (1, HIDDEN) for the lane-dense layer-3 matmul.
        self.w3t = jnp.transpose(self.w3)
        # One-hot selector row that extracts the flag column via an (exact) matmul.
        self.flag_sel = jnp.zeros((1, feat), dtype).at[0, self.x_len - 1].set(1.0)

    def _params(self):
        return (self.w1, self.b1, self.w2, self.b2, self.w3, self.b3)

    def is_finite(self):
        return bool(all(bool(jnp.isfinite(p).all()) for p in self._params()))

    def forward(self, data, *, block_batch=None):
        batch, feat = data.shape
        assert feat == self.x_len + self.a_len, "data width must be x_len + a_len"

        bb = self.block_batch if block_batch is None else int(block_batch)
        tb = _pick_batch_tile(batch, bb)
        grid = (pl.cdiv(batch, tb),)

        kernel = functools.partial(_flexible_absorbing_kernel,
                                   absorbing_val=self.absorbing_val)

        itemsize = int(jnp.dtype(data.dtype).itemsize)
        weight_bytes = 4 * ((feat + 1) * HIDDEN + (HIDDEN + 1) * HIDDEN
                            + HIDDEN + 1 + feat)
        cost = pl.CostEstimate(
            flops=int(2 * batch * (feat * HIDDEN + HIDDEN * HIDDEN + HIDDEN + feat)),
            transcendentals=int(2 * batch * HIDDEN),          # tanh in the two GELUs
            bytes_accessed=int(itemsize * batch * (feat + 1) + weight_bytes),
        )

        out_row = pl.pallas_call(
            kernel,
            out_shape=jax.ShapeDtypeStruct((1, batch), data.dtype),   # lane-dense row
            grid_spec=pl.GridSpec(
                grid=grid,
                in_specs=[
                    pl.BlockSpec((tb, feat), lambda i: (i, 0)),        # data (batch-tiled)
                    pl.BlockSpec((1, feat), lambda i: (0, 0)),         # flag one-hot row
                    pl.BlockSpec((feat, HIDDEN), lambda i: (0, 0)),    # w1 (zero-padded)
                    pl.BlockSpec((1, HIDDEN), lambda i: (0, 0)),       # b1
                    pl.BlockSpec((HIDDEN, HIDDEN), lambda i: (0, 0)),  # w2
                    pl.BlockSpec((1, HIDDEN), lambda i: (0, 0)),       # b2
                    pl.BlockSpec((1, HIDDEN), lambda i: (0, 0)),       # w3^T
                    pl.BlockSpec((1, 1), lambda i: (0, 0)),            # b3
                ],
                out_specs=pl.BlockSpec((1, tb), lambda i: (0, i)),
            ),
            compiler_params=pltpu.CompilerParams(
                dimension_semantics=("parallel",),   # batch tiles independent (v7x 2 TCs)
            ),
            cost_estimate=cost,
        )(data, self.flag_sel, self.w1p, self.b1, self.w2, self.b2, self.w3t, self.b3)

        # (1, batch) -> (batch, 1): identical memory order, pure metadata reshape.
        return out_row.reshape(batch, 1)

    __call__ = forward


def reference_forward(net, data, *, gelu="erf"):
    """Pure-JAX mirror of the PyTorch forward. gelu='erf' matches nn.GELU() exactly;
    gelu='tanh' matches the kernel's approximation (mechanics check)."""
    x_len = net.x_len
    flag = data[:, x_len - 1: x_len]
    xa = jnp.concatenate([data[:, : x_len - 1], data[:, x_len:]], axis=1)

    if gelu == "erf":
        act = lambda v: 0.5 * v * (1.0 + _erf_exact(v * _SQRT_HALF))
    else:
        act = _gelu

    with jax.default_matmul_precision("highest"):
        h = act(xa @ net.w1 + net.b1)
        h = act(h @ net.w2 + net.b2)
        o = h @ net.w3 + net.b3
    return o * (1.0 - flag) + net.absorbing_val * flag


if __name__ == "__main__":
    # Small shapes consistent with the module: x_len=32 state features (flag column
    # folded in), a_len=8 action features, num_a=4, data width = x_len + a_len = 40.
    x_len, a_len, num_a = 32, 8, 4
    absorbing_val = -7.5
    batch = 256

    key = jax.random.PRNGKey(0)
    k_init, k_data, k_flag = jax.random.split(key, 3)

    data = jax.random.normal(k_data, (batch, x_len + a_len), dtype=jnp.float32)
    absorbing_flag = (jax.random.uniform(k_flag, (batch,)) < 0.25).astype(jnp.float32)
    data = data.at[:, x_len - 1].set(absorbing_flag)   # flag column is 0/1

    net = FlexibleAbsorbingNetPallas(x_len, a_len, num_a, absorbing_val, key=k_init)
    assert net.is_finite()

    ref_erf = reference_forward(net, data, gelu="erf")    # exact nn.GELU() semantics
    ref_tanh = reference_forward(net, data, gelu="tanh")  # same math as the kernel

    def check(out, n):
        assert out.shape == (n, 1)
        assert out.dtype == data.dtype
        err_mech = float(jnp.max(jnp.abs(out - ref_tanh[:n])))
        err_sem = float(jnp.max(jnp.abs(out - ref_erf[:n])))
        assert err_mech < 5e-4, f"kernel vs tanh-GELU reference: max_err={err_mech}"
        assert err_sem < 5e-3, f"kernel vs exact-erf reference: max_err={err_sem}"
        # Absorbing rows must equal absorbing_val exactly.
        assert bool(jnp.all(jnp.where(absorbing_flag[:n, None] == 1.0,
                                      out == absorbing_val, True)))

    # 1) Single full-extent tile (batch <= block tile).
    out = jax.block_until_ready(net(data))
    check(out, batch)

    # 2) Multi-tile, lane-aligned blocks (grid > 1, "parallel" sharding path).
    out2 = jax.block_until_ready(net.forward(data, block_batch=128))
    check(out2, batch)

    # 3) Ragged batch -> partial last tile (masked stores on the lane-dense output).
    out3 = jax.block_until_ready(net.forward(data[:200], block_batch=128))
    check(out3, 200)

    print("KERNEL_OK")
</pallas_src>

<mosaic_0001>
module attributes {stable_mosaic.version = 11 : i64} {
  func.func @_flexible_absorbing_kernel(%arg0: i32, %arg1: memref<256x40xf32, #tpu.memory_space<vmem>>, %arg2: memref<1x40xf32, #tpu.memory_space<vmem>>, %arg3: memref<40x50xf32, #tpu.memory_space<vmem>>, %arg4: memref<1x50xf32, #tpu.memory_space<vmem>>, %arg5: memref<50x50xf32, #tpu.memory_space<vmem>>, %arg6: memref<1x50xf32, #tpu.memory_space<vmem>>, %arg7: memref<1x50xf32, #tpu.memory_space<vmem>>, %arg8: memref<1x1xf32, #tpu.memory_space<vmem>>, %arg9: memref<1x256xf32, #tpu.memory_space<vmem>>) attributes {dimension_semantics = [#tpu.dimension_semantics<parallel>], iteration_bounds = array<i64: 1>, scalar_prefetch = 0 : i64, scratch_operands = 0 : i64, tpu.core_type = #tpu.core_type<tc>, window_params = [{transform_indices = @transform_0, window_bounds = array<i64: 256, 40>}, {pipeline_mode = #tpu.pipeline_mode<synchronous>, transform_indices = @transform_1, window_bounds = array<i64: 1, 40>}, {pipeline_mode = #tpu.pipeline_mode<synchronous>, transform_indices = @transform_2, window_bounds = array<i64: 40, 50>}, {pipeline_mode = #tpu.pipeline_mode<synchronous>, transform_indices = @transform_3, window_bounds = array<i64: 1, 50>}, {pipeline_mode = #tpu.pipeline_mode<synchronous>, transform_indices = @transform_4, window_bounds = array<i64: 50, 50>}, {pipeline_mode = #tpu.pipeline_mode<synchronous>, transform_indices = @transform_5, window_bounds = array<i64: 1, 50>}, {pipeline_mode = #tpu.pipeline_mode<synchronous>, transform_indices = @transform_6, window_bounds = array<i64: 1, 50>}, {pipeline_mode = #tpu.pipeline_mode<synchronous>, transform_indices = @transform_7, window_bounds = array<i64: 1, 1>}, {transform_indices = @transform_8, window_bounds = array<i64: 1, 256>}]} {
    %c0 = arith.constant 0 : index
    %c0_0 = arith.constant 0 : index
    %0 = vector.load %arg1[%c0, %c0_0] : memref<256x40xf32, #tpu.memory_space<vmem>>, vector<256x40xf32>
    %c0_1 = arith.constant 0 : index
    %c0_2 = arith.constant 0 : index
    %1 = vector.load %arg3[%c0_1, %c0_2] : memref<40x50xf32, #tpu.memory_space<vmem>>, vector<40x50xf32>
    %cst = arith.constant dense<0.000000e+00> : vector<256x50xf32>
    %2 = tpu.matmul %0, %1, %cst {dimension_numbers = #tpu.dot_dimension_numbers<[1], [0], [0], [1], [0, 0, 1, 1], [], []>} : vector<256x40xf32>, vector<40x50xf32>, vector<256x50xf32> -> vector<256x50xf32>
    %c0_3 = arith.constant 0 : index
    %c0_4 = arith.constant 0 : index
    %3 = vector.load %arg4[%c0_3, %c0_4] : memref<1x50xf32, #tpu.memory_space<vmem>>, vector<1x50xf32>
    %4 = vector.broadcast %3 : vector<1x50xf32> to vector<256x50xf32>
    %5 = arith.addf %2, %4 : vector<256x50xf32>
    %cst_5 = arith.constant 5.000000e-01 : f32
    %6 = vector.broadcast %cst_5 : f32 to vector<256x50xf32>
    %7 = arith.mulf %6, %5 : vector<256x50xf32>
    %cst_6 = arith.constant 4.471500e-02 : f32
    %8 = vector.broadcast %cst_6 : f32 to vector<256x50xf32>
    %9 = arith.mulf %8, %5 : vector<256x50xf32>
    %10 = arith.mulf %9, %5 : vector<256x50xf32>
    %11 = arith.mulf %10, %5 : vector<256x50xf32>
    %12 = arith.addf %5, %11 : vector<256x50xf32>
    %cst_7 = arith.constant 0.797884583 : f32
    %13 = vector.broadcast %cst_7 : f32 to vector<256x50xf32>
    %14 = arith.mulf %13, %12 : vector<256x50xf32>
    %15 = math.tanh %14 : vector<256x50xf32>
    %cst_8 = arith.constant 1.000000e+00 : f32
    %16 = vector.broadcast %cst_8 : f32 to vector<256x50xf32>
    %17 = arith.addf %16, %15 : vector<256x50xf32>
    %18 = arith.mulf %7, %17 : vector<256x50xf32>
    %c0_9 = arith.constant 0 : index
    %c0_10 = arith.constant 0 : index
    %19 = vector.load %arg5[%c0_9, %c0_10] : memref<50x50xf32, #tpu.memory_space<vmem>>, vector<50x50xf32>
    %cst_11 = arith.constant dense<0.000000e+00> : vector<256x50xf32>
    %20 = tpu.matmul %18, %19, %cst_11 {dimension_numbers = #tpu.dot_dimension_numbers<[1], [0], [0], [1], [0, 0, 1, 1], [], []>} : vector<256x50xf32>, vector<50x50xf32>, vector<256x50xf32> -> vector<256x50xf32>
    %c0_12 = arith.constant 0 : index
    %c0_13 = arith.constant 0 : index
    %21 = vector.load %arg6[%c0_12, %c0_13] : memref<1x50xf32, #tpu.memory_space<vmem>>, vector<1x50xf32>
    %22 = vector.broadcast %21 : vector<1x50xf32> to vector<256x50xf32>
    %23 = arith.addf %20, %22 : vector<256x50xf32>
    %cst_14 = arith.constant 5.000000e-01 : f32
    %24 = vector.broadcast %cst_14 : f32 to vector<256x50xf32>
    %25 = arith.mulf %24, %23 : vector<256x50xf32>
    %cst_15 = arith.constant 4.471500e-02 : f32
    %26 = vector.broadcast %cst_15 : f32 to vector<256x50xf32>
    %27 = arith.mulf %26, %23 : vector<256x50xf32>
    %28 = arith.mulf %27, %23 : vector<256x50xf32>
    %29 = arith.mulf %28, %23 : vector<256x50xf32>
    %30 = arith.addf %23, %29 : vector<256x50xf32>
    %cst_16 = arith.constant 0.797884583 : f32
    %31 = vector.broadcast %cst_16 : f32 to vector<256x50xf32>
    %32 = arith.mulf %31, %30 : vector<256x50xf32>
    %33 = math.tanh %32 : vector<256x50xf32>
    %cst_17 = arith.constant 1.000000e+00 : f32
    %34 = vector.broadcast %cst_17 : f32 to vector<256x50xf32>
    %35 = arith.addf %34, %33 : vector<256x50xf32>
    %36 = arith.mulf %25, %35 : vector<256x50xf32>
    %c0_18 = arith.constant 0 : index
    %c0_19 = arith.constant 0 : index
    %37 = vector.load %arg7[%c0_18, %c0_19] : memref<1x50xf32, #tpu.memory_space<vmem>>, vector<1x50xf32>
    %cst_20 = arith.constant dense<0.000000e+00> : vector<1x256xf32>
    %38 = tpu.matmul %37, %36, %cst_20 {dimension_numbers = #tpu.dot_dimension_numbers<[1], [1], [0], [0], [0, 0, 1, 0], [], []>} : vector<1x50xf32>, vector<256x50xf32>, vector<1x256xf32> -> vector<1x256xf32>
    %c0_21 = arith.constant 0 : index
    %c0_22 = arith.constant 0 : index
    %39 = vector.load %arg8[%c0_21, %c0_22] : memref<1x1xf32, #tpu.memory_space<vmem>>, vector<1x1xf32>
    %40 = vector.broadcast %39 : vector<1x1xf32> to vector<1x256xf32>
    %41 = arith.addf %38, %40 : vector<1x256xf32>
    %c0_23 = arith.constant 0 : index
    %c0_24 = arith.constant 0 : index
    %42 = vector.load %arg2[%c0_23, %c0_24] : memref<1x40xf32, #tpu.memory_space<vmem>>, vector<1x40xf32>
    %cst_25 = arith.constant dense<0.000000e+00> : vector<1x256xf32>
    %43 = tpu.matmul %42, %0, %cst_25 {dimension_numbers = #tpu.dot_dimension_numbers<[1], [1], [0], [0], [0, 0, 1, 0], [], []>} : vector<1x40xf32>, vector<256x40xf32>, vector<1x256xf32> -> vector<1x256xf32>
    %cst_26 = arith.constant 0.000000e+00 : f32
    %44 = vector.broadcast %cst_26 : f32 to vector<1x256xf32>
    %45 = arith.cmpf one, %43, %44 : vector<1x256xf32>
    %cst_27 = arith.constant -7.500000e+00 : f32
    %46 = vector.broadcast %cst_27 : f32 to vector<1x256xf32>
    %47 = arith.select %45, %46, %41 : vector<1x256xi1>, vector<1x256xf32>
    %c0_28 = arith.constant 0 : index
    %c0_29 = arith.constant 0 : index
    %48 = vector.load %arg9[%c0_28, %c0_29] : memref<1x256xf32, #tpu.memory_space<vmem>>, vector<1x256xf32>
    tpu.vector_store %arg9[%c0_28, %c0_29], %47 {strides = array<i32>} : memref<1x256xf32, #tpu.memory_space<vmem>>, vector<1x256xf32>,
    return
  }
  func.func @transform_0(%arg0: i32) -> (i32, i32) {
    %c0_i32 = arith.constant 0 : i32
    %c0_i32_0 = arith.constant 0 : i32
    return %arg0, %c0_i32 : i32, i32
  }
  func.func @transform_1(%arg0: i32) -> (i32, i32) {
    %c0_i32 = arith.constant 0 : i32
    %c0_i32_0 = arith.constant 0 : i32
    %c0_i32_1 = arith.constant 0 : i32
    return %c0_i32, %c0_i32_0 : i32, i32
  }
  func.func @transform_2(%arg0: i32) -> (i32, i32) {
    %c0_i32 = arith.constant 0 : i32
    %c0_i32_0 = arith.constant 0 : i32
    %c0_i32_1 = arith.constant 0 : i32
    return %c0_i32, %c0_i32_0 : i32, i32
  }
  func.func @transform_3(%arg0: i32) -> (i32, i32) {
    %c0_i32 = arith.constant 0 : i32
    %c0_i32_0 = arith.constant 0 : i32
    %c0_i32_1 = arith.constant 0 : i32
    return %c0_i32, %c0_i32_0 : i32, i32
  }
  func.func @transform_4(%arg0: i32) -> (i32, i32) {
    %c0_i32 = arith.constant 0 : i32
    %c0_i32_0 = arith.constant 0 : i32
    %c0_i32_1 = arith.constant 0 : i32
    return %c0_i32, %c0_i32_0 : i32, i32
  }
  func.func @transform_5(%arg0: i32) -> (i32, i32) {
    %c0_i32 = arith.constant 0 : i32
    %c0_i32_0 = arith.constant 0 : i32
    %c0_i32_1 = arith.constant 0 : i32
    return %c0_i32, %c0_i32_0 : i32, i32
  }
  func.func @transform_6(%arg0: i32) -> (i32, i32) {
    %c0_i32 = arith.constant 0 : i32
    %c0_i32_0 = arith.constant 0 : i32
    %c0_i32_1 = arith.constant 0 : i32
    return %c0_i32, %c0_i32_0 : i32, i32
  }
  func.func @transform_7(%arg0: i32) -> (i32, i32) {
    %c0_i32 = arith.constant 0 : i32
    %c0_i32_0 = arith.constant 0 : i32
    %c0_i32_1 = arith.constant 0 : i32
    return %c0_i32, %c0_i32_0 : i32, i32
  }
  func.func @transform_8(%arg0: i32) -> (i32, i32) {
    %c0_i32 = arith.constant 0 : i32
    %c0_i32_0 = arith.constant 0 : i32
    return %c0_i32, %arg0 : i32, i32
  }
}

</mosaic_0001>

<llo_original>
// kernel: tpu_custom_call.1
$region0: #{tpu_custom_call.1}
  #allocation0 [shape = 'u32[]', space=smem, size = 0x4, offset = 0x4, fixed_abs, tag = 'smem constant byte address 0x4 - core index']
  #allocation1 [shape = 'u32[72,128]{1,0:T(1,128)}', space=vmem, size = 0x9000, scoped, tag = 'internal scratch']
  #allocation2 [shape = 'f32[1,1]{1,0:T(1,128)S(1)}', space=vmem, size = 0x200, scoped, tag = 'scoped memory for tpu_custom_call.1']
  %s0 = inlined_call_operand.vmem [shape: f32[256,40], index: 0, kind: input, shape index: {}]
  %s1 = inlined_call_operand.vmem [shape: f32[1,40], index: 1, kind: input, shape index: {}]
  %s2 = inlined_call_operand.vmem [shape: f32[40,50], index: 2, kind: input, shape index: {}]
  %s3 = inlined_call_operand.vmem [shape: f32[1,50], index: 3, kind: input, shape index: {}]
  %s4 = inlined_call_operand.vmem [shape: f32[50,50], index: 4, kind: input, shape index: {}]
  %s5 = inlined_call_operand.vmem [shape: f32[1,50], index: 5, kind: input, shape index: {}]
  %s6 = inlined_call_operand.vmem [shape: f32[1,50], index: 6, kind: input, shape index: {}]
  %s7 = inlined_call_operand.<no memory space> [shape: f32[1,1], index: 7, kind: input, shape index: {}]
  %s8 = inlined_call_operand.hbm [shape: f32[1,256], index: 8, kind: output, shape index: {}]
  %s9 = sld [smem:[#allocation0]]
  $region42: #{tpu_custom_call.1} parent=0
    _
  %s11 = ssub.s32 1, %s9
  %s12 = scalar_select 0, %s11, %s9
  %v13 = vstv %s7
  %14 = vst [vmem:[#allocation2] sm:$0x1] %v13
  $region1: #{tpu_custom_call.1} parent=0
    #allocation3 [shape = 'u8[1024]{0}', space=vmem, size = 0x400, scoped, tag = 'output window, operand 0, single buffered']
    #allocation4 [shape = 's32[1]{0}', space=sflag, size = 0x4, scoped, tag = 'scoped memory for tpu_custom_call.1']
    %15 = vsyncpa [#allocation4], 0
    // Predicated region
    $region2: #{tpu_custom_call.1} parent=1 // pred_check
      _
    $region3: #{tpu_custom_call.1} parent=1 // pred_check_branch
      %17 = sbr.rel (0) target = $region5
    $region4: #{tpu_custom_call.1} parent=1 // pred_region
      _
    $region5: #{tpu_custom_call.1} parent=1 // pred_fallthru
      _
    // Predicated region
    $region6: #{tpu_custom_call.1} parent=1 // pred_check
      _
    $region7: #{tpu_custom_call.1} parent=1 // pred_check_branch
      %19 = sbr.rel (0) target = $region9
    $region8: #{tpu_custom_call.1} parent=1 // pred_region
      _
    $region9: #{tpu_custom_call.1} parent=1 // pred_fallthru
      _
    // Predicated region
    $region10: #{tpu_custom_call.1} parent=1 // pred_check
      _
    $region11: #{tpu_custom_call.1} parent=1 // pred_check_branch
      %21 = sbr.rel (0) target = $region13
    $region12: #{tpu_custom_call.1} parent=1 // pred_region
      _
    $region13: #{tpu_custom_call.1} parent=1 // pred_fallthru
      _
    // Predicated region
    $region14: #{tpu_custom_call.1} parent=1 // pred_check
      _
    $region15: #{tpu_custom_call.1} parent=1 // pred_check_branch
      %23 = sbr.rel (0) target = $region17
    $region16: #{tpu_custom_call.1} parent=1 // pred_region
      _
    $region17: #{tpu_custom_call.1} parent=1 // pred_fallthru
      _
    // Predicated region
    $region18: #{tpu_custom_call.1} parent=1 // pred_check
      _
    $region19: #{tpu_custom_call.1} parent=1 // pred_check_branch
      %25 = sbr.rel (0) target = $region21
    $region20: #{tpu_custom_call.1} parent=1 // pred_region
      _
    $region21: #{tpu_custom_call.1} parent=1 // pred_fallthru
      _
    // Predicated region
    $region22: #{tpu_custom_call.1} parent=1 // pred_check
      _
    $region23: #{tpu_custom_call.1} parent=1 // pred_check_branch
      %27 = sbr.rel (0) target = $region25
    $region24: #{tpu_custom_call.1} parent=1 // pred_region
      _
    $region25: #{tpu_custom_call.1} parent=1 // pred_fallthru
      _
    // Predicated region
    $region26: #{tpu_custom_call.1} parent=1 // pred_check
      _
    $region27: #{tpu_custom_call.1} parent=1 // pred_check_branch
      %29 = sbr.rel (0) target = $region29
    $region28: #{tpu_custom_call.1} parent=1 // pred_region
      _
    $region29: #{tpu_custom_call.1} parent=1 // pred_fallthru
      _
    // Predicated region
    $region30: #{tpu_custom_call.1} parent=1 // pred_check
      _
    $region31: #{tpu_custom_call.1} parent=1 // pred_check_branch
      %31 = sbr.rel (0) target = $region33
    $region32: #{tpu_custom_call.1} parent=1 // pred_region
      _
    $region33: #{tpu_custom_call.1} parent=1 // pred_fallthru
      _
    %v32 = vld [vmem:[%s0] sm:$0xff]
    %v33 = vld [vmem:[%s0 + $0x8] sm:$0xff]
    %v34 = vld [vmem:[%s0 + $0x10] sm:$0xff]
    %v35 = vld [vmem:[%s0 + $0x18] sm:$0xff]
    %v36 = vld [vmem:[%s0 + $0x20] sm:$0xff]
    %v37 = vld [vmem:[%s0 + $0x28] sm:$0xff]
    %v38 = vld [vmem:[%s0 + $0x30] sm:$0xff]
    %v39 = vld [vmem:[%s0 + $0x38] sm:$0xff]
    %v40 = vld [vmem:[%s0 + $0x40] sm:$0xff]
    %v41 = vld [vmem:[%s0 + $0x48] sm:$0xff]
    %v42 = vld [vmem:[%s0 + $0x50] sm:$0xff]
    %v43 = vld [vmem:[%s0 + $0x58] sm:$0xff]
    %v44 = vld [vmem:[%s0 + $0x60] sm:$0xff]
    %v45 = vld [vmem:[%s0 + $0x68] sm:$0xff]
    %v46 = vld [vmem:[%s0 + $0x70] sm:$0xff]
    %v47 = vld [vmem:[%s0 + $0x78] sm:$0xff]
    %v48 = vld [vmem:[%s0 + $0x80] sm:$0xff]
    %v49 = vld [vmem:[%s0 + $0x88] sm:$0xff]
    %v50 = vld [vmem:[%s0 + $0x90] sm:$0xff]
    %v51 = vld [vmem:[%s0 + $0x98] sm:$0xff]
    %v52 = vld [vmem:[%s0 + $0xa0] sm:$0xff]
    %v53 = vld [vmem:[%s0 + $0xa8] sm:$0xff]
    %v54 = vld [vmem:[%s0 + $0xb0] sm:$0xff]
    %v55 = vld [vmem:[%s0 + $0xb8] sm:$0xff]
    %v56 = vld [vmem:[%s0 + $0xc0] sm:$0xff]
    %v57 = vld [vmem:[%s0 + $0xc8] sm:$0xff]
    %v58 = vld [vmem:[%s0 + $0xd0] sm:$0xff]
    %v59 = vld [vmem:[%s0 + $0xd8] sm:$0xff]
    %v60 = vld [vmem:[%s0 + $0xe0] sm:$0xff]
    %v61 = vld [vmem:[%s0 + $0xe8] sm:$0xff]
    %v62 = vld [vmem:[%s0 + $0xf0] sm:$0xff]
    %v63 = vld [vmem:[%s0 + $0xf8] sm:$0xff]
    %v64 = vld [vmem:[%s2] sm:$0xff]
    %v65 = vld [vmem:[%s2 + $0x8] sm:$0xff]
    %v66 = vld [vmem:[%s2 + $0x10] sm:$0xff]
    %v67 = vld [vmem:[%s2 + $0x18] sm:$0xff]
    %v68 = vld [vmem:[%s2 + $0x20] sm:$0xff]
    %v69 = vld [vmem:[%s3] sm:$0x1]
    %v71 = vperm.slane %v69, 0
    %vm73 = vcmask 326656
    %v75 = vsel %vm73, %v32, 0
    %v78 = vsel %vm73, %v33, 0
    %v81 = vsel %vm73, %v34, 0
    %v84 = vsel %vm73, %v35, 0
    %v87 = vsel %vm73, %v36, 0
    %v90 = vsel %vm73, %v37, 0
    %v93 = vsel %vm73, %v38, 0
    %v96 = vsel %vm73, %v39, 0
    %v99 = vsel %vm73, %v40, 0
    %v102 = vsel %vm73, %v41, 0
    %v105 = vsel %vm73, %v42, 0
    %v108 = vsel %vm73, %v43, 0
    %v111 = vsel %vm73, %v44, 0
    %v114 = vsel %vm73, %v45, 0
    %v117 = vsel %vm73, %v46, 0
    %v120 = vsel %vm73, %v47, 0
    %v123 = vsel %vm73, %v48, 0
    %v126 = vsel %vm73, %v49, 0
    %v129 = vsel %vm73, %v50, 0
    %v132 = vsel %vm73, %v51, 0
    %v135 = vsel %vm73, %v52, 0
    %v138 = vsel %vm73, %v53, 0
    %v141 = vsel %vm73, %v54, 0
    %v144 = vsel %vm73, %v55, 0
    %v147 = vsel %vm73, %v56, 0
    %v150 = vsel %vm73, %v57, 0
    %v153 = vsel %vm73, %v58, 0
    %v156 = vsel %vm73, %v59, 0
    %v159 = vsel %vm73, %v60, 0
    %v162 = vsel %vm73, %v61, 0
    %v165 = vsel %vm73, %v62, 0
    %v168 = vsel %vm73, %v63, 0
    %170 = vmatpush.msra.mxu0 0.0
    %171 = vmatpush.msra.mxu0 0.0
    %172 = vmatpush.msra.mxu0 0.0
    %173 = vmatpush.msra.mxu0 0.0
    %174 = vmatpush.msra.mxu0 0.0
    %175 = vmatpush.msra.mxu0 0.0
    %176 = vmatpush.msra.mxu0 0.0
    %177 = vmatpush.msra.mxu0 0.0
    %178 = vmatpush.msra.mxu0 0.0
    %179 = vmatpush.msra.mxu0 0.0
    %180 = vmatpush.msra.mxu0 0.0
    %181 = vmatpush.msra.mxu0 %v68
    %182 = vmatpush.msra.mxu0 %v67
    %183 = vmatpush.msra.mxu0 %v66
    %184 = vmatpush.msra.mxu0 %v65
    %185 = vmatpush.msra.mxu0 %v64
    %186 = vmatmul.f32.gmra.mxu0 %v75
    %v187 = vpop.f32.mrf.mxu0
    %v188 = vadd.f32 %v71, %v187
    %189 = vmatmul.f32.gmra.mxu0 %v78
    %v190 = vpop.f32.mrf.mxu0
    %v191 = vadd.f32 %v71, %v190
    %192 = vmatmul.f32.gmra.mxu0 %v81
    %v193 = vpop.f32.mrf.mxu0
    %v194 = vadd.f32 %v71, %v193
    %195 = vmatmul.f32.gmra.mxu0 %v84
    %v196 = vpop.f32.mrf.mxu0
    %v197 = vadd.f32 %v71, %v196
    %198 = vmatmul.f32.gmra.mxu0 %v87
    %v199 = vpop.f32.mrf.mxu0
    %v200 = vadd.f32 %v71, %v199
    %201 = vmatmul.f32.gmra.mxu0 %v90
    %v202 = vpop.f32.mrf.mxu0
    %v203 = vadd.f32 %v71, %v202
    %204 = vmatmul.f32.gmra.mxu0 %v93
    %v205 = vpop.f32.mrf.mxu0
    %v206 = vadd.f32 %v71, %v205
    %207 = vmatmul.f32.gmra.mxu0 %v96
    %v208 = vpop.f32.mrf.mxu0
    %v209 = vadd.f32 %v71, %v208
    %210 = vmatmul.f32.gmra.mxu0 %v99
    %v211 = vpop.f32.mrf.mxu0
    %v212 = vadd.f32 %v71, %v211
    %213 = vmatmul.f32.gmra.mxu0 %v102
    %v214 = vpop.f32.mrf.mxu0
    %v215 = vadd.f32 %v71, %v214
    %216 = vmatmul.f32.gmra.mxu0 %v105
    %v217 = vpop.f32.mrf.mxu0
    %v218 = vadd.f32 %v71, %v217
    %219 = vmatmul.f32.gmra.mxu0 %v108
    %v220 = vpop.f32.mrf.mxu0
    %v221 = vadd.f32 %v71, %v220
    %222 = vmatmul.f32.gmra.mxu0 %v111
    %v223 = vpop.f32.mrf.mxu0
    %v224 = vadd.f32 %v71, %v223
    %225 = vmatmul.f32.gmra.mxu0 %v114
    %v226 = vpop.f32.mrf.mxu0
    %v227 = vadd.f32 %v71, %v226
    %228 = vmatmul.f32.gmra.mxu0 %v117
    %v229 = vpop.f32.mrf.mxu0
    %v230 = vadd.f32 %v71, %v229
    %231 = vmatmul.f32.gmra.mxu0 %v120
    %v232 = vpop.f32.mrf.mxu0
    %v233 = vadd.f32 %v71, %v232
    %234 = vmatmul.f32.gmra.mxu0 %v123
    %v235 = vpop.f32.mrf.mxu0
    %v236 = vadd.f32 %v71, %v235
    %237 = vmatmul.f32.gmra.mxu0 %v126
    %v238 = vpop.f32.mrf.mxu0
    %v239 = vadd.f32 %v71, %v238
    %240 = vmatmul.f32.gmra.mxu0 %v129
    %v241 = vpop.f32.mrf.mxu0
    %v242 = vadd.f32 %v71, %v241
    %243 = vmatmul.f32.gmra.mxu0 %v132
    %v244 = vpop.f32.mrf.mxu0
    %v245 = vadd.f32 %v71, %v244
    %246 = vmatmul.f32.gmra.mxu0 %v135
    %v247 = vpop.f32.mrf.mxu0
    %v248 = vadd.f32 %v71, %v247
    %249 = vmatmul.f32.gmra.mxu0 %v138
    %v250 = vpop.f32.mrf.mxu0
    %v251 = vadd.f32 %v71, %v250
    %252 = vmatmul.f32.gmra.mxu0 %v141
    %v253 = vpop.f32.mrf.mxu0
    %v254 = vadd.f32 %v71, %v253
    %255 = vmatmul.f32.gmra.mxu0 %v144
    %v256 = vpop.f32.mrf.mxu0
    %v257 = vadd.f32 %v71, %v256
    %258 = vmatmul.f32.gmra.mxu0 %v147
    %v259 = vpop.f32.mrf.mxu0
    %v260 = vadd.f32 %v71, %v259
    %261 = vmatmul.f32.gmra.mxu0 %v150
    %v262 = vpop.f32.mrf.mxu0
    %v263 = vadd.f32 %v71, %v262
    %264 = vmatmul.f32.gmra.mxu0 %v153
    %v265 = vpop.f32.mrf.mxu0
    %v266 = vadd.f32 %v71, %v265
    %267 = vmatmul.f32.gmra.mxu0 %v156
    %v268 = vpop.f32.mrf.mxu0
    %v269 = vadd.f32 %v71, %v268
    %270 = vmatmul.f32.gmra.mxu0 %v159
    %v271 = vpop.f32.mrf.mxu0
    %v272 = vadd.f32 %v71, %v271
    %273 = vmatmul.f32.gmra.mxu0 %v162
    %v274 = vpop.f32.mrf.mxu0
    %v275 = vadd.f32 %v71, %v274
    %276 = vmatmul.f32.gmra.mxu0 %v165
    %v277 = vpop.f32.mrf.mxu0
    %v278 = vadd.f32 %v71, %v277
    %279 = vmatmul.f32.gmra.mxu0 %v168
    %v280 = vpop.f32.mrf.mxu0
    %v281 = vadd.f32 %v71, %v280
    %282 = vdwg.mxu0
    %v283 = vmul.f32 %v188, 0.5
    %v284 = vmul.f32 %v191, 0.5
    %v285 = vmul.f32 %v194, 0.5
    %v286 = vmul.f32 %v197, 0.5
    %v287 = vmul.f32 %v200, 0.5
    %v288 = vmul.f32 %v203, 0.5
    %v289 = vmul.f32 %v206, 0.5
    %v290 = vmul.f32 %v209, 0.5
    %v291 = vmul.f32 %v212, 0.5
    %v292 = vmul.f32 %v215, 0.5
    %v293 = vmul.f32 %v218, 0.5
    %v294 = vmul.f32 %v221, 0.5
    %v295 = vmul.f32 %v224, 0.5
    %v296 = vmul.f32 %v227, 0.5
    %v297 = vmul.f32 %v230, 0.5
    %v298 = vmul.f32 %v233, 0.5
    %v299 = vmul.f32 %v236, 0.5
    %v300 = vmul.f32 %v239, 0.5
    %v301 = vmul.f32 %v242, 0.5
    %v302 = vmul.f32 %v245, 0.5
    %v303 = vmul.f32 %v248, 0.5
    %v304 = vmul.f32 %v251, 0.5
    %v305 = vmul.f32 %v254, 0.5
    %v306 = vmul.f32 %v257, 0.5
    %v307 = vmul.f32 %v260, 0.5
    %v308 = vmul.f32 %v263, 0.5
    %v309 = vmul.f32 %v266, 0.5
    %v310 = vmul.f32 %v269, 0.5
    %v311 = vmul.f32 %v272, 0.5
    %v312 = vmul.f32 %v275, 0.5
    %v313 = vmul.f32 %v278, 0.5
    %v314 = vmul.f32 %v281, 0.5
    %v315 = vmul.f32 %v188, 0.044715
    %v316 = vmul.f32 %v191, 0.044715
    %v317 = vmul.f32 %v194, 0.044715
    %v318 = vmul.f32 %v197, 0.044715
    %v319 = vmul.f32 %v200, 0.044715
    %v320 = vmul.f32 %v203, 0.044715
    %v321 = vmul.f32 %v206, 0.044715
    %v322 = vmul.f32 %v209, 0.044715
    %v323 = vmul.f32 %v212, 0.044715
    %v324 = vmul.f32 %v215, 0.044715
    %v325 = vmul.f32 %v218, 0.044715
    %v326 = vmul.f32 %v221, 0.044715
    %v327 = vmul.f32 %v224, 0.044715
    %v328 = vmul.f32 %v227, 0.044715
    %v329 = vmul.f32 %v230, 0.044715
    %v330 = vmul.f32 %v233, 0.044715
    %v331 = vmul.f32 %v236, 0.044715
    %v332 = vmul.f32 %v239, 0.044715
    %v333 = vmul.f32 %v242, 0.044715
    %v334 = vmul.f32 %v245, 0.044715
    %v335 = vmul.f32 %v248, 0.044715
    %v336 = vmul.f32 %v251, 0.044715
    %v337 = vmul.f32 %v254, 0.044715
    %v338 = vmul.f32 %v257, 0.044715
    %v339 = vmul.f32 %v260, 0.044715
    %v340 = vmul.f32 %v263, 0.044715
    %v341 = vmul.f32 %v266, 0.044715
    %v342 = vmul.f32 %v269, 0.044715
    %v343 = vmul.f32 %v272, 0.044715
    %v344 = vmul.f32 %v275, 0.044715
    %v345 = vmul.f32 %v278, 0.044715
    %v346 = vmul.f32 %v281, 0.044715
    %v347 = vmul.f32 %v315, %v188
    %v348 = vmul.f32 %v316, %v191
    %v349 = vmul.f32 %v317, %v194
    %v350 = vmul.f32 %v318, %v197
    %v351 = vmul.f32 %v319, %v200
    %v352 = vmul.f32 %v320, %v203
    %v353 = vmul.f32 %v321, %v206
    %v354 = vmul.f32 %v322, %v209
    %v355 = vmul.f32 %v323, %v212
    %v356 = vmul.f32 %v324, %v215
    %v357 = vmul.f32 %v325, %v218
    %v358 = vmul.f32 %v326, %v221
    %v359 = vmul.f32 %v327, %v224
    %v360 = vmul.f32 %v328, %v227
    %v361 = vmul.f32 %v329, %v230
    %v362 = vmul.f32 %v330, %v233
    %v363 = vmul.f32 %v331, %v236
    %v364 = vmul.f32 %v332, %v239
    %v365 = vmul.f32 %v333, %v242
    %v366 = vmul.f32 %v334, %v245
    %v367 = vmul.f32 %v335, %v248
    %v368 = vmul.f32 %v336, %v251
    %v369 = vmul.f32 %v337, %v254
    %v370 = vmul.f32 %v338, %v257
    %v371 = vmul.f32 %v339, %v260
    %v372 = vmul.f32 %v340, %v263
    %v373 = vmul.f32 %v341, %v266
    %v374 = vmul.f32 %v342, %v269
    %v375 = vmul.f32 %v343, %v272
    %v376 = vmul.f32 %v344, %v275
    %v377 = vmul.f32 %v345, %v278
    %v378 = vmul.f32 %v346, %v281
    %v379 = vmul.f32 %v347, %v188
    %v380 = vmul.f32 %v348, %v191
    %v381 = vmul.f32 %v349, %v194
    %v382 = vmul.f32 %v350, %v197
    %v383 = vmul.f32 %v351, %v200
    %v384 = vmul.f32 %v352, %v203
    %v385 = vmul.f32 %v353, %v206
    %v386 = vmul.f32 %v354, %v209
    %v387 = vmul.f32 %v355, %v212
    %v388 = vmul.f32 %v356, %v215
    %v389 = vmul.f32 %v357, %v218
    %v390 = vmul.f32 %v358, %v221
    %v391 = vmul.f32 %v359, %v224
    %v392 = vmul.f32 %v360, %v227
    %v393 = vmul.f32 %v361, %v230
    %v394 = vmul.f32 %v362, %v233
    %v395 = vmul.f32 %v363, %v236
    %v396 = vmul.f32 %v364, %v239
    %v397 = vmul.f32 %v365, %v242
    %v398 = vmul.f32 %v366, %v245
    %v399 = vmul.f32 %v367, %v248
    %v400 = vmul.f32 %v368, %v251
    %v401 = vmul.f32 %v369, %v254
    %v402 = vmul.f32 %v370, %v257
    %v403 = vmul.f32 %v371, %v260
    %v404 = vmul.f32 %v372, %v263
    %v405 = vmul.f32 %v373, %v266
    %v406 = vmul.f32 %v374, %v269
    %v407 = vmul.f32 %v375, %v272
    %v408 = vmul.f32 %v376, %v275
    %v409 = vmul.f32 %v377, %v278
    %v410 = vmul.f32 %v378, %v281
    %v411 = vadd.f32 %v188, %v379
    %v412 = vadd.f32 %v191, %v380
    %v413 = vadd.f32 %v194, %v381
    %v414 = vadd.f32 %v197, %v382
    %v415 = vadd.f32 %v200, %v383
    %v416 = vadd.f32 %v203, %v384
    %v417 = vadd.f32 %v206, %v385
    %v418 = vadd.f32 %v209, %v386
    %v419 = vadd.f32 %v212, %v387
    %v420 = vadd.f32 %v215, %v388
    %v421 = vadd.f32 %v218, %v389
    %v422 = vadd.f32 %v221, %v390
    %v423 = vadd.f32 %v224, %v391
    %v424 = vadd.f32 %v227, %v392
    %v425 = vadd.f32 %v230, %v393
    %v426 = vadd.f32 %v233, %v394
    %v427 = vadd.f32 %v236, %v395
    %v428 = vadd.f32 %v239, %v396
    %v429 = vadd.f32 %v242, %v397
    %v430 = vadd.f32 %v245, %v398
    %v431 = vadd.f32 %v248, %v399
    %v432 = vadd.f32 %v251, %v400
    %v433 = vadd.f32 %v254, %v401
    %v434 = vadd.f32 %v257, %v402
    %v435 = vadd.f32 %v260, %v403
    %v436 = vadd.f32 %v263, %v404
    %v437 = vadd.f32 %v266, %v405
    %v438 = vadd.f32 %v269, %v406
    %v439 = vadd.f32 %v272, %v407
    %v440 = vadd.f32 %v275, %v408
    %v441 = vadd.f32 %v278, %v409
    %v442 = vadd.f32 %v281, %v410
    %v443 = vmul.f32 %v411, 0.7978846
    %v444 = vmul.f32 %v412, 0.7978846
    %v445 = vmul.f32 %v413, 0.7978846
    %v446 = vmul.f32 %v414, 0.7978846
    %v447 = vmul.f32 %v415, 0.7978846
    %v448 = vmul.f32 %v416, 0.7978846
    %v449 = vmul.f32 %v417, 0.7978846
    %v450 = vmul.f32 %v418, 0.7978846
    %v451 = vmul.f32 %v419, 0.7978846
    %v452 = vmul.f32 %v420, 0.7978846
    %v453 = vmul.f32 %v421, 0.7978846
    %v454 = vmul.f32 %v422, 0.7978846
    %v455 = vmul.f32 %v423, 0.7978846
    %v456 = vmul.f32 %v424, 0.7978846
    %v457 = vmul.f32 %v425, 0.7978846
    %v458 = vmul.f32 %v426, 0.7978846
    %v459 = vmul.f32 %v427, 0.7978846
    %v460 = vmul.f32 %v428, 0.7978846
    %v461 = vmul.f32 %v429, 0.7978846
    %v462 = vmul.f32 %v430, 0.7978846
    %v463 = vmul.f32 %v431, 0.7978846
    %v464 = vmul.f32 %v432, 0.7978846
    %v465 = vmul.f32 %v433, 0.7978846
    %v466 = vmul.f32 %v434, 0.7978846
    %v467 = vmul.f32 %v435, 0.7978846
    %v468 = vmul.f32 %v436, 0.7978846
    %v469 = vmul.f32 %v437, 0.7978846
    %v470 = vmul.f32 %v438, 0.7978846
    %v471 = vmul.f32 %v439, 0.7978846
    %v472 = vmul.f32 %v440, 0.7978846
    %v473 = vmul.f32 %v441, 0.7978846
    %v474 = vmul.f32 %v442, 0.7978846
    %v475 = vtanh.pop %v443
    %v476 = vtanh.pop %v444
    %v477 = vtanh.pop %v445
    %v478 = vtanh.pop %v446
    %v479 = vtanh.pop %v447
    %v480 = vtanh.pop %v448
    %v481 = vtanh.pop %v449
    %v482 = vtanh.pop %v450
    %v483 = vtanh.pop %v451
    %v484 = vtanh.pop %v452
    %v485 = vtanh.pop %v453
    %v486 = vtanh.pop %v454
    %v487 = vtanh.pop %v455
    %v488 = vtanh.pop %v456
    %v489 = vtanh.pop %v457
    %v490 = vtanh.pop %v458
    %v491 = vtanh.pop %v459
    %v492 = vtanh.pop %v460
    %v493 = vtanh.pop %v461
    %v494 = vtanh.pop %v462
    %v495 = vtanh.pop %v463
    %v496 = vtanh.pop %v464
    %v497 = vtanh.pop %v465
    %v498 = vtanh.pop %v466
    %v499 = vtanh.pop %v467
    %v500 = vtanh.pop %v468
    %v501 = vtanh.pop %v469
    %v502 = vtanh.pop %v470
    %v503 = vtanh.pop %v471
    %v504 = vtanh.pop %v472
    %v505 = vtanh.pop %v473
    %v506 = vtanh.pop %v474
    %v507 = vadd.f32 %v475, 1.0
    %v508 = vadd.f32 %v476, 1.0
    %v509 = vadd.f32 %v477, 1.0
    %v510 = vadd.f32 %v478, 1.0
    %v511 = vadd.f32 %v479, 1.0
    %v512 = vadd.f32 %v480, 1.0
    %v513 = vadd.f32 %v481, 1.0
    %v514 = vadd.f32 %v482, 1.0
    %v515 = vadd.f32 %v483, 1.0
    %v516 = vadd.f32 %v484, 1.0
    %v517 = vadd.f32 %v485, 1.0
    %v518 = vadd.f32 %v486, 1.0
    %v519 = vadd.f32 %v487, 1.0
    %v520 = vadd.f32 %v488, 1.0
    %v521 = vadd.f32 %v489, 1.0
    %v522 = vadd.f32 %v490, 1.0
    %v523 = vadd.f32 %v491, 1.0
    %v524 = vadd.f32 %v492, 1.0
    %v525 = vadd.f32 %v493, 1.0
    %v526 = vadd.f32 %v494, 1.0
    %v527 = vadd.f32 %v495, 1.0
    %v528 = vadd.f32 %v496, 1.0
    %v529 = vadd.f32 %v497, 1.0
    %v530 = vadd.f32 %v498, 1.0
    %v531 = vadd.f32 %v499, 1.0
    %v532 = vadd.f32 %v500, 1.0
    %v533 = vadd.f32 %v501, 1.0
    %v534 = vadd.f32 %v502, 1.0
    %v535 = vadd.f32 %v503, 1.0
    %v536 = vadd.f32 %v504, 1.0
    %v537 = vadd.f32 %v505, 1.0
    %v538 = vadd.f32 %v506, 1.0
    %v539 = vmul.f32 %v283, %v507
    %v540 = vmul.f32 %v284, %v508
    %v541 = vmul.f32 %v285, %v509
    %v542 = vmul.f32 %v286, %v510
    %v543 = vmul.f32 %v287, %v511
    %v544 = vmul.f32 %v288, %v512
    %v545 = vmul.f32 %v289, %v513
    %v546 = vmul.f32 %v290, %v514
    %v547 = vmul.f32 %v291, %v515
    %v548 = vmul.f32 %v292, %v516
    %v549 = vmul.f32 %v293, %v517
    %v550 = vmul.f32 %v294, %v518
    %v551 = vmul.f32 %v295, %v519
    %v552 = vmul.f32 %v296, %v520
    %v553 = vmul.f32 %v297, %v521
    %v554 = vmul.f32 %v298, %v522
    %v555 = vmul.f32 %v299, %v523
    %v556 = vmul.f32 %v300, %v524
    %v557 = vmul.f32 %v301, %v525
    %v558 = vmul.f32 %v302, %v526
    %v559 = vmul.f32 %v303, %v527
    %v560 = vmul.f32 %v304, %v528
    %v561 = vmul.f32 %v305, %v529
    %v562 = vmul.f32 %v306, %v530
    %v563 = vmul.f32 %v307, %v531
    %v564 = vmul.f32 %v308, %v532
    %v565 = vmul.f32 %v309, %v533
    %v566 = vmul.f32 %v310, %v534
    %v567 = vmul.f32 %v311, %v535
    %v568 = vmul.f32 %v312, %v536
    %v569 = vmul.f32 %v313, %v537
    %v570 = vmul.f32 %v314, %v538
    %v571 = vld [vmem:[%s4] sm:$0xff]
    %v572 = vld [vmem:[%s4 + $0x8] sm:$0xff]
    %v573 = vld [vmem:[%s4 + $0x10] sm:$0xff]
    %v574 = vld [vmem:[%s4 + $0x18] sm:$0xff]
    %v575 = vld [vmem:[%s4 + $0x20] sm:$0xff]
    %v576 = vld [vmem:[%s4 + $0x28] sm:$0xff]
    %v577 = vld [vmem:[%s4 + $0x30] sm:$0x3]
    %v578 = vld [vmem:[%s5] sm:$0x1]
    %v580 = vperm.slane %v578, 0
    %vm582 = vcmask 408576
    %v584 = vsel %vm582, %v539, 0
    %v587 = vsel %vm582, %v540, 0
    %v590 = vsel %vm582, %v541, 0
    %v593 = vsel %vm582, %v542, 0
    %v596 = vsel %vm582, %v543, 0
    %v599 = vsel %vm582, %v544, 0
    %v602 = vsel %vm582, %v545, 0
    %v605 = vsel %vm582, %v546, 0
    %v608 = vsel %vm582, %v547, 0
    %v611 = vsel %vm582, %v548, 0
    %v614 = vsel %vm582, %v549, 0
    %v617 = vsel %vm582, %v550, 0
    %v620 = vsel %vm582, %v551, 0
    %v623 = vsel %vm582, %v552, 0
    %v626 = vsel %vm582, %v553, 0
    %v629 = vsel %vm582, %v554, 0
    %v632 = vsel %vm582, %v555, 0
    %v635 = vsel %vm582, %v556, 0
    %v638 = vsel %vm582, %v557, 0
    %v641 = vsel %vm582, %v558, 0
    %v644 = vsel %vm582, %v559, 0
    %v647 = vsel %vm582, %v560, 0
    %v650 = vsel %vm582, %v561, 0
    %v653 = vsel %vm582, %v562, 0
    %v656 = vsel %vm582, %v563, 0
    %v659 = vsel %vm582, %v564, 0
    %v662 = vsel %vm582, %v565, 0
    %v665 = vsel %vm582, %v566, 0
    %v668 = vsel %vm582, %v567, 0
    %v671 = vsel %vm582, %v568, 0
    %v674 = vsel %vm582, %v569, 0
    %v677 = vsel %vm582, %v570, 0
    %vm679 = vcmask 1041408
    %v681 = vsel %vm679, %v577, 0
    %683 = vmatpush.msra.mxu0 0.0
    %684 = vmatpush.msra.mxu0 0.0
    %685 = vmatpush.msra.mxu0 0.0
    %686 = vmatpush.msra.mxu0 0.0
    %687 = vmatpush.msra.mxu0 0.0
    %688 = vmatpush.msra.mxu0 0.0
    %689 = vmatpush.msra.mxu0 0.0
    %690 = vmatpush.msra.mxu0 0.0
    %691 = vmatpush.msra.mxu0 0.0
    %692 = vmatpush.msra.mxu0 %v681
    %693 = vmatpush.msra.mxu0 %v576
    %694 = vmatpush.msra.mxu0 %v575
    %695 = vmatpush.msra.mxu0 %v574
    %696 = vmatpush.msra.mxu0 %v573
    %697 = vmatpush.msra.mxu0 %v572
    %698 = vmatpush.msra.mxu0 %v571
    %699 = vmatmul.f32.gmra.mxu0 %v584
    %v700 = vpop.f32.mrf.mxu0
    %v701 = vadd.f32 %v580, %v700
    %702 = vmatmul.f32.gmra.mxu0 %v587
    %v703 = vpop.f32.mrf.mxu0
    %v704 = vadd.f32 %v580, %v703
    %705 = vmatmul.f32.gmra.mxu0 %v590
    %v706 = vpop.f32.mrf.mxu0
    %v707 = vadd.f32 %v580, %v706
    %708 = vmatmul.f32.gmra.mxu0 %v593
    %v709 = vpop.f32.mrf.mxu0
    %v710 = vadd.f32 %v580, %v709
    %711 = vmatmul.f32.gmra.mxu0 %v596
    %v712 = vpop.f32.mrf.mxu0
    %v713 = vadd.f32 %v580, %v712
    %714 = vmatmul.f32.gmra.mxu0 %v599
    %v715 = vpop.f32.mrf.mxu0
    %v716 = vadd.f32 %v580, %v715
    %717 = vmatmul.f32.gmra.mxu0 %v602
    %v718 = vpop.f32.mrf.mxu0
    %v719 = vadd.f32 %v580, %v718
    %720 = vmatmul.f32.gmra.mxu0 %v605
    %v721 = vpop.f32.mrf.mxu0
    %v722 = vadd.f32 %v580, %v721
    %723 = vmatmul.f32.gmra.mxu0 %v608
    %v724 = vpop.f32.mrf.mxu0
    %v725 = vadd.f32 %v580, %v724
    %726 = vmatmul.f32.gmra.mxu0 %v611
    %v727 = vpop.f32.mrf.mxu0
    %v728 = vadd.f32 %v580, %v727
    %729 = vmatmul.f32.gmra.mxu0 %v614
    %v730 = vpop.f32.mrf.mxu0
    %v731 = vadd.f32 %v580, %v730
    %732 = vmatmul.f32.gmra.mxu0 %v617
    %v733 = vpop.f32.mrf.mxu0
    %v734 = vadd.f32 %v580, %v733
    %735 = vmatmul.f32.gmra.mxu0 %v620
    %v736 = vpop.f32.mrf.mxu0
    %v737 = vadd.f32 %v580, %v736
    %738 = vmatmul.f32.gmra.mxu0 %v623
    %v739 = vpop.f32.mrf.mxu0
    %v740 = vadd.f32 %v580, %v739
    %741 = vmatmul.f32.gmra.mxu0 %v626
    %v742 = vpop.f32.mrf.mxu0
    %v743 = vadd.f32 %v580, %v742
    %744 = vmatmul.f32.gmra.mxu0 %v629
    %v745 = vpop.f32.mrf.mxu0
    %v746 = vadd.f32 %v580, %v745
    %747 = vmatmul.f32.gmra.mxu0 %v632
    %v748 = vpop.f32.mrf.mxu0
    %v749 = vadd.f32 %v580, %v748
    %750 = vmatmul.f32.gmra.mxu0 %v635
    %v751 = vpop.f32.mrf.mxu0
    %v752 = vadd.f32 %v580, %v751
    %753 = vmatmul.f32.gmra.mxu0 %v638
    %v754 = vpop.f32.mrf.mxu0
    %v755 = vadd.f32 %v580, %v754
    %756 = vmatmul.f32.gmra.mxu0 %v641
    %v757 = vpop.f32.mrf.mxu0
    %v758 = vadd.f32 %v580, %v757
    %759 = vmatmul.f32.gmra.mxu0 %v644
    %v760 = vpop.f32.mrf.mxu0
    %v761 = vadd.f32 %v580, %v760
    %762 = vmatmul.f32.gmra.mxu0 %v647
    %v763 = vpop.f32.mrf.mxu0
    %v764 = vadd.f32 %v580, %v763
    %765 = vmatmul.f32.gmra.mxu0 %v650
    %v766 = vpop.f32.mrf.mxu0
    %v767 = vadd.f32 %v580, %v766
    %768 = vmatmul.f32.gmra.mxu0 %v653
    %v769 = vpop.f32.mrf.mxu0
    %v770 = vadd.f32 %v580, %v769
    %771 = vmatmul.f32.gmra.mxu0 %v656
    %v772 = vpop.f32.mrf.mxu0
    %v773 = vadd.f32 %v580, %v772
    %774 = vmatmul.f32.gmra.mxu0 %v659
    %v775 = vpop.f32.mrf.mxu0
    %v776 = vadd.f32 %v580, %v775
    %777 = vmatmul.f32.gmra.mxu0 %v662
    %v778 = vpop.f32.mrf.mxu0
    %v779 = vadd.f32 %v580, %v778
    %780 = vmatmul.f32.gmra.mxu0 %v665
    %v781 = vpop.f32.mrf.mxu0
    %v782 = vadd.f32 %v580, %v781
    %783 = vmatmul.f32.gmra.mxu0 %v668
    %v784 = vpop.f32.mrf.mxu0
    %v785 = vadd.f32 %v580, %v784
    %786 = vmatmul.f32.gmra.mxu0 %v671
    %v787 = vpop.f32.mrf.mxu0
    %v788 = vadd.f32 %v580, %v787
    %789 = vmatmul.f32.gmra.mxu0 %v674
    %v790 = vpop.f32.mrf.mxu0
    %v791 = vadd.f32 %v580, %v790
    %792 = vmatmul.f32.gmra.mxu0 %v677
    %v793 = vpop.f32.mrf.mxu0
    %v794 = vadd.f32 %v580, %v793
    %795 = vdwg.mxu0
    %v796 = vmul.f32 %v701, 0.5
    %v797 = vmul.f32 %v704, 0.5
    %v798 = vmul.f32 %v707, 0.5
    %v799 = vmul.f32 %v710, 0.5
    %v800 = vmul.f32 %v713, 0.5
    %v801 = vmul.f32 %v716, 0.5
    %v802 = vmul.f32 %v719, 0.5
    %v803 = vmul.f32 %v722, 0.5
    %v804 = vmul.f32 %v725, 0.5
    %v805 = vmul.f32 %v728, 0.5
    %v806 = vmul.f32 %v731, 0.5
    %v807 = vmul.f32 %v734, 0.5
    %v808 = vmul.f32 %v737, 0.5
    %v809 = vmul.f32 %v740, 0.5
    %v810 = vmul.f32 %v743, 0.5
    %v811 = vmul.f32 %v746, 0.5
    %v812 = vmul.f32 %v749, 0.5
    %v813 = vmul.f32 %v752, 0.5
    %v814 = vmul.f32 %v755, 0.5
    %v815 = vmul.f32 %v758, 0.5
    %v816 = vmul.f32 %v761, 0.5
    %v817 = vmul.f32 %v764, 0.5
    %v818 = vmul.f32 %v767, 0.5
    %v819 = vmul.f32 %v770, 0.5
    %v820 = vmul.f32 %v773, 0.5
    %v821 = vmul.f32 %v776, 0.5
    %v822 = vmul.f32 %v779, 0.5
    %v823 = vmul.f32 %v782, 0.5
    %v824 = vmul.f32 %v785, 0.5
    %v825 = vmul.f32 %v788, 0.5
    %v826 = vmul.f32 %v791, 0.5
    %v827 = vmul.f32 %v794, 0.5
    %v828 = vmul.f32 %v701, 0.044715
    %v829 = vmul.f32 %v704, 0.044715
    %v830 = vmul.f32 %v707, 0.044715
    %v831 = vmul.f32 %v710, 0.044715
    %v832 = vmul.f32 %v713, 0.044715
    %v833 = vmul.f32 %v716, 0.044715
    %v834 = vmul.f32 %v719, 0.044715
    %v835 = vmul.f32 %v722, 0.044715
    %v836 = vmul.f32 %v725, 0.044715
    %v837 = vmul.f32 %v728, 0.044715
    %v838 = vmul.f32 %v731, 0.044715
    %v839 = vmul.f32 %v734, 0.044715
    %v840 = vmul.f32 %v737, 0.044715
    %v841 = vmul.f32 %v740, 0.044715
    %v842 = vmul.f32 %v743, 0.044715
    %v843 = vmul.f32 %v746, 0.044715
    %v844 = vmul.f32 %v749, 0.044715
    %v845 = vmul.f32 %v752, 0.044715
    %v846 = vmul.f32 %v755, 0.044715
    %v847 = vmul.f32 %v758, 0.044715
    %v848 = vmul.f32 %v761, 0.044715
    %v849 = vmul.f32 %v764, 0.044715
    %v850 = vmul.f32 %v767, 0.044715
    %v851 = vmul.f32 %v770, 0.044715
    %v852 = vmul.f32 %v773, 0.044715
    %v853 = vmul.f32 %v776, 0.044715
    %v854 = vmul.f32 %v779, 0.044715
    %v855 = vmul.f32 %v782, 0.044715
    %v856 = vmul.f32 %v785, 0.044715
    %v857 = vmul.f32 %v788, 0.044715
    %v858 = vmul.f32 %v791, 0.044715
    %v859 = vmul.f32 %v794, 0.044715
    %v860 = vmul.f32 %v828, %v701
    %v861 = vmul.f32 %v829, %v704
    %v862 = vmul.f32 %v830, %v707
    %v863 = vmul.f32 %v831, %v710
    %v864 = vmul.f32 %v832, %v713
    %v865 = vmul.f32 %v833, %v716
    %v866 = vmul.f32 %v834, %v719
    %v867 = vmul.f32 %v835, %v722
    %v868 = vmul.f32 %v836, %v725
    %v869 = vmul.f32 %v837, %v728
    %v870 = vmul.f32 %v838, %v731
    %v871 = vmul.f32 %v839, %v734
    %v872 = vmul.f32 %v840, %v737
    %v873 = vmul.f32 %v841, %v740
    %v874 = vmul.f32 %v842, %v743
    %v875 = vmul.f32 %v843, %v746
    %v876 = vmul.f32 %v844, %v749
    %v877 = vmul.f32 %v845, %v752
    %v878 = vmul.f32 %v846, %v755
    %v879 = vmul.f32 %v847, %v758
    %v880 = vmul.f32 %v848, %v761
    %v881 = vmul.f32 %v849, %v764
    %v882 = vmul.f32 %v850, %v767
    %v883 = vmul.f32 %v851, %v770
    %v884 = vmul.f32 %v852, %v773
    %v885 = vmul.f32 %v853, %v776
    %v886 = vmul.f32 %v854, %v779
    %v887 = vmul.f32 %v855, %v782
    %v888 = vmul.f32 %v856, %v785
    %v889 = vmul.f32 %v857, %v788
    %v890 = vmul.f32 %v858, %v791
    %v891 = vmul.f32 %v859, %v794
    %v892 = vmul.f32 %v860, %v701
    %v893 = vmul.f32 %v861, %v704
    %v894 = vmul.f32 %v862, %v707
    %v895 = vmul.f32 %v863, %v710
    %v896 = vmul.f32 %v864, %v713
    %v897 = vmul.f32 %v865, %v716
    %v898 = vmul.f32 %v866, %v719
    %v899 = vmul.f32 %v867, %v722
    %v900 = vmul.f32 %v868, %v725
    %v901 = vmul.f32 %v869, %v728
    %v902 = vmul.f32 %v870, %v731
    %v903 = vmul.f32 %v871, %v734
    %v904 = vmul.f32 %v872, %v737
    %v905 = vmul.f32 %v873, %v740
    %v906 = vmul.f32 %v874, %v743
    %v907 = vmul.f32 %v875, %v746
    %v908 = vmul.f32 %v876, %v749
    %v909 = vmul.f32 %v877, %v752
    %v910 = vmul.f32 %v878, %v755
    %v911 = vmul.f32 %v879, %v758
    %v912 = vmul.f32 %v880, %v761
    %v913 = vmul.f32 %v881, %v764
    %v914 = vmul.f32 %v882, %v767
    %v915 = vmul.f32 %v883, %v770
    %v916 = vmul.f32 %v884, %v773
    %v917 = vmul.f32 %v885, %v776
    %v918 = vmul.f32 %v886, %v779
    %v919 = vmul.f32 %v887, %v782
    %v920 = vmul.f32 %v888, %v785
    %v921 = vmul.f32 %v889, %v788
    %v922 = vmul.f32 %v890, %v791
    %v923 = vmul.f32 %v891, %v794
    %v924 = vadd.f32 %v701, %v892
    %v925 = vadd.f32 %v704, %v893
    %v926 = vadd.f32 %v707, %v894
    %v927 = vadd.f32 %v710, %v895
    %v928 = vadd.f32 %v713, %v896
    %v929 = vadd.f32 %v716, %v897
    %v930 = vadd.f32 %v719, %v898
    %v931 = vadd.f32 %v722, %v899
    %v932 = vadd.f32 %v725, %v900
    %v933 = vadd.f32 %v728, %v901
    %v934 = vadd.f32 %v731, %v902
    %v935 = vadd.f32 %v734, %v903
    %v936 = vadd.f32 %v737, %v904
    %v937 = vadd.f32 %v740, %v905
    %v938 = vadd.f32 %v743, %v906
    %v939 = vadd.f32 %v746, %v907
    %v940 = vadd.f32 %v749, %v908
    %v941 = vadd.f32 %v752, %v909
    %v942 = vadd.f32 %v755, %v910
    %v943 = vadd.f32 %v758, %v911
    %v944 = vadd.f32 %v761, %v912
    %v945 = vadd.f32 %v764, %v913
    %v946 = vadd.f32 %v767, %v914
    %v947 = vadd.f32 %v770, %v915
    %v948 = vadd.f32 %v773, %v916
    %v949 = vadd.f32 %v776, %v917
    %v950 = vadd.f32 %v779, %v918
    %v951 = vadd.f32 %v782, %v919
    %v952 = vadd.f32 %v785, %v920
    %v953 = vadd.f32 %v788, %v921
    %v954 = vadd.f32 %v791, %v922
    %v955 = vadd.f32 %v794, %v923
    %v956 = vmul.f32 %v924, 0.7978846
    %v957 = vmul.f32 %v925, 0.7978846
    %v958 = vmul.f32 %v926, 0.7978846
    %v959 = vmul.f32 %v927, 0.7978846
    %v960 = vmul.f32 %v928, 0.7978846
    %v961 = vmul.f32 %v929, 0.7978846
    %v962 = vmul.f32 %v930, 0.7978846
    %v963 = vmul.f32 %v931, 0.7978846
    %v964 = vmul.f32 %v932, 0.7978846
    %v965 = vmul.f32 %v933, 0.7978846
    %v966 = vmul.f32 %v934, 0.7978846
    %v967 = vmul.f32 %v935, 0.7978846
    %v968 = vmul.f32 %v936, 0.7978846
    %v969 = vmul.f32 %v937, 0.7978846
    %v970 = vmul.f32 %v938, 0.7978846
    %v971 = vmul.f32 %v939, 0.7978846
    %v972 = vmul.f32 %v940, 0.7978846
    %v973 = vmul.f32 %v941, 0.7978846
    %v974 = vmul.f32 %v942, 0.7978846
    %v975 = vmul.f32 %v943, 0.7978846
    %v976 = vmul.f32 %v944, 0.7978846
    %v977 = vmul.f32 %v945, 0.7978846
    %v978 = vmul.f32 %v946, 0.7978846
    %v979 = vmul.f32 %v947, 0.7978846
    %v980 = vmul.f32 %v948, 0.7978846
    %v981 = vmul.f32 %v949, 0.7978846
    %v982 = vmul.f32 %v950, 0.7978846
    %v983 = vmul.f32 %v951, 0.7978846
    %v984 = vmul.f32 %v952, 0.7978846
    %v985 = vmul.f32 %v953, 0.7978846
    %v986 = vmul.f32 %v954, 0.7978846
    %v987 = vmul.f32 %v955, 0.7978846
    %v988 = vtanh.pop %v956
    %v989 = vtanh.pop %v957
    %v990 = vtanh.pop %v958
    %v991 = vtanh.pop %v959
    %v992 = vtanh.pop %v960
    %v993 = vtanh.pop %v961
    %v994 = vtanh.pop %v962
    %v995 = vtanh.pop %v963
    %v996 = vtanh.pop %v964
    %v997 = vtanh.pop %v965
    %v998 = vtanh.pop %v966
    %v999 = vtanh.pop %v967
    %v1000 = vtanh.pop %v968
    %v1001 = vtanh.pop %v969
    %v1002 = vtanh.pop %v970
    %v1003 = vtanh.pop %v971
    %v1004 = vtanh.pop %v972
    %v1005 = vtanh.pop %v973
    %v1006 = vtanh.pop %v974
    %v1007 = vtanh.pop %v975
    %v1008 = vtanh.pop %v976
    %v1009 = vtanh.pop %v977
    %v1010 = vtanh.pop %v978
    %v1011 = vtanh.pop %v979
    %v1012 = vtanh.pop %v980
    %v1013 = vtanh.pop %v981
    %v1014 = vtanh.pop %v982
    %v1015 = vtanh.pop %v983
    %v1016 = vtanh.pop %v984
    %v1017 = vtanh.pop %v985
    %v1018 = vtanh.pop %v986
    %v1019 = vtanh.pop %v987
    %v1020 = vadd.f32 %v988, 1.0
    %v1021 = vadd.f32 %v989, 1.0
    %v1022 = vadd.f32 %v990, 1.0
    %v1023 = vadd.f32 %v991, 1.0
    %v1024 = vadd.f32 %v992, 1.0
    %v1025 = vadd.f32 %v993, 1.0
    %v1026 = vadd.f32 %v994, 1.0
    %v1027 = vadd.f32 %v995, 1.0
    %v1028 = vadd.f32 %v996, 1.0
    %v1029 = vadd.f32 %v997, 1.0
    %v1030 = vadd.f32 %v998, 1.0
    %v1031 = vadd.f32 %v999, 1.0
    %v1032 = vadd.f32 %v1000, 1.0
    %v1033 = vadd.f32 %v1001, 1.0
    %v1034 = vadd.f32 %v1002, 1.0
    %v1035 = vadd.f32 %v1003, 1.0
    %v1036 = vadd.f32 %v1004, 1.0
    %v1037 = vadd.f32 %v1005, 1.0
    %v1038 = vadd.f32 %v1006, 1.0
    %v1039 = vadd.f32 %v1007, 1.0
    %v1040 = vadd.f32 %v1008, 1.0
    %v1041 = vadd.f32 %v1009, 1.0
    %v1042 = vadd.f32 %v1010, 1.0
    %v1043 = vadd.f32 %v1011, 1.0
    %v1044 = vadd.f32 %v1012, 1.0
    %v1045 = vadd.f32 %v1013, 1.0
    %v1046 = vadd.f32 %v1014, 1.0
    %v1047 = vadd.f32 %v1015, 1.0
    %v1048 = vadd.f32 %v1016, 1.0
    %v1049 = vadd.f32 %v1017, 1.0
    %v1050 = vadd.f32 %v1018, 1.0
    %v1051 = vadd.f32 %v1019, 1.0
    %v1052 = vmul.f32 %v796, %v1020
    %v1053 = vmul.f32 %v797, %v1021
    %v1054 = vmul.f32 %v798, %v1022
    %v1055 = vmul.f32 %v799, %v1023
    %v1056 = vmul.f32 %v800, %v1024
    %v1057 = vmul.f32 %v801, %v1025
    %v1058 = vmul.f32 %v802, %v1026
    %v1059 = vmul.f32 %v803, %v1027
    %v1060 = vmul.f32 %v804, %v1028
    %v1061 = vmul.f32 %v805, %v1029
    %v1062 = vmul.f32 %v806, %v1030
    %v1063 = vmul.f32 %v807, %v1031
    %v1064 = vmul.f32 %v808, %v1032
    %v1065 = vmul.f32 %v809, %v1033
    %v1066 = vmul.f32 %v810, %v1034
    %v1067 = vmul.f32 %v811, %v1035
    %v1068 = vmul.f32 %v812, %v1036
    %v1069 = vmul.f32 %v813, %v1037
    %v1070 = vmul.f32 %v814, %v1038
    %v1071 = vmul.f32 %v815, %v1039
    %v1072 = vmul.f32 %v816, %v1040
    %v1073 = vmul.f32 %v817, %v1041
    %v1074 = vmul.f32 %v818, %v1042
    %v1075 = vmul.f32 %v819, %v1043
    %v1076 = vmul.f32 %v820, %v1044
    %v1077 = vmul.f32 %v821, %v1045
    %v1078 = vmul.f32 %v822, %v1046
    %v1079 = vmul.f32 %v823, %v1047
    %v1080 = vmul.f32 %v824, %v1048
    %v1081 = vmul.f32 %v825, %v1049
    %v1082 = vmul.f32 %v826, %v1050
    %v1083 = vmul.f32 %v827, %v1051
    %v1084 = vld [vmem:[%s6] sm:$0x1]
    %v1085 = vld [vmem:[#allocation2] sm:$0x1]
    %1087 = vset.pattern.permute.xlu0 0
    %1088 = vperm.xlu0 %1087, %v1085
    %v1089 = vpop.permute.xlu0 %1088
    %v1091 = vperm.slane %v1089, 0
    %v1093 = vsel %vm582, %v1084, 0
    %v1096 = vsel %vm582, %v1052, 0
    %v1099 = vsel %vm582, %v1053, 0
    %v1102 = vsel %vm582, %v1054, 0
    %v1105 = vsel %vm582, %v1055, 0
    %v1108 = vsel %vm582, %v1056, 0
    %v1111 = vsel %vm582, %v1057, 0
    %v1114 = vsel %vm582, %v1058, 0
    %v1117 = vsel %vm582, %v1059, 0
    %v1120 = vsel %vm582, %v1060, 0
    %v1123 = vsel %vm582, %v1061, 0
    %v1126 = vsel %vm582, %v1062, 0
    %v1129 = vsel %vm582, %v1063, 0
    %v1132 = vsel %vm582, %v1064, 0
    %v1135 = vsel %vm582, %v1065, 0
    %v1138 = vsel %vm582, %v1066, 0
    %v1141 = vsel %vm582, %v1067, 0
    %v1144 = vsel %vm582, %v1068, 0
    %v1147 = vsel %vm582, %v1069, 0
    %v1150 = vsel %vm582, %v1070, 0
    %v1153 = vsel %vm582, %v1071, 0
    %v1156 = vsel %vm582, %v1072, 0
    %v1159 = vsel %vm582, %v1073, 0
    %v1162 = vsel %vm582, %v1074, 0
    %v1165 = vsel %vm582, %v1075, 0
    %v1168 = vsel %vm582, %v1076, 0
    %v1171 = vsel %vm582, %v1077, 0
    %v1174 = vsel %vm582, %v1078, 0
    %v1177 = vsel %vm582, %v1079, 0
    %v1180 = vsel %vm582, %v1080, 0
    %v1183 = vsel %vm582, %v1081, 0
    %v1186 = vsel %vm582, %v1082, 0
    %v1189 = vsel %vm582, %v1083, 0
    %1191 = vmatpush.xpose.msra.mxu0 %v1141
    %1192 = vmatpush.xpose.msra.mxu0 %v1138
    %1193 = vmatpush.xpose.msra.mxu0 %v1135
    %1194 = vmatpush.xpose.msra.mxu0 %v1132
    %1195 = vmatpush.xpose.msra.mxu0 %v1129
    %1196 = vmatpush.xpose.msra.mxu0 %v1126
    %1197 = vmatpush.xpose.msra.mxu0 %v1123
    %1198 = vmatpush.xpose.msra.mxu0 %v1120
    %1199 = vmatpush.xpose.msra.mxu0 %v1117
    %1200 = vmatpush.xpose.msra.mxu0 %v1114
    %1201 = vmatpush.xpose.msra.mxu0 %v1111
    %1202 = vmatpush.xpose.msra.mxu0 %v1108
    %1203 = vmatpush.xpose.msra.mxu0 %v1105
    %1204 = vmatpush.xpose.msra.mxu0 %v1102
    %1205 = vmatpush.xpose.msra.mxu0 %v1099
    %1206 = vmatpush.xpose.msra.mxu0 %v1096
    %1207 = vmatmul.f32.gmra.mxu0 %v1093
    %v1208 = vpop.f32.mrf.mxu0
    %v1209 = vadd.f32 %v1091, %v1208
    %1210 = vdwg.mxu0
    %1211 = vmatpush.xpose.msra.mxu0 %v1189
    %1212 = vmatpush.xpose.msra.mxu0 %v1186
    %1213 = vmatpush.xpose.msra.mxu0 %v1183
    %1214 = vmatpush.xpose.msra.mxu0 %v1180
    %1215 = vmatpush.xpose.msra.mxu0 %v1177
    %1216 = vmatpush.xpose.msra.mxu0 %v1174
    %1217 = vmatpush.xpose.msra.mxu0 %v1171
    %1218 = vmatpush.xpose.msra.mxu0 %v1168
    %1219 = vmatpush.xpose.msra.mxu0 %v1165
    %1220 = vmatpush.xpose.msra.mxu0 %v1162
    %1221 = vmatpush.xpose.msra.mxu0 %v1159
    %1222 = vmatpush.xpose.msra.mxu0 %v1156
    %1223 = vmatpush.xpose.msra.mxu0 %v1153
    %1224 = vmatpush.xpose.msra.mxu0 %v1150
    %1225 = vmatpush.xpose.msra.mxu0 %v1147
    %1226 = vmatpush.xpose.msra.mxu0 %v1144
    %1227 = vmatmul.f32.gmra.mxu0 %v1093
    %v1228 = vpop.f32.mrf.mxu0
    %v1229 = vadd.f32 %v1091, %v1228
    %1230 = vdwg.mxu0
    %v1231 = vld [vmem:[%s1] sm:$0x1]
    %v1233 = vsel %vm73, %v1231, 0
    %1235 = vmatpush.xpose.msra.mxu0 %v120
    %1236 = vmatpush.xpose.msra.mxu0 %v117
    %1237 = vmatpush.xpose.msra.mxu0 %v114
    %1238 = vmatpush.xpose.msra.mxu0 %v111
    %1239 = vmatpush.xpose.msra.mxu0 %v108
    %1240 = vmatpush.xpose.msra.mxu0 %v105
    %1241 = vmatpush.xpose.msra.mxu0 %v102
    %1242 = vmatpush.xpose.msra.mxu0 %v99
    %1243 = vmatpush.xpose.msra.mxu0 %v96
    %1244 = vmatpush.xpose.msra.mxu0 %v93
    %1245 = vmatpush.xpose.msra.mxu0 %v90
    %1246 = vmatpush.xpose.msra.mxu0 %v87
    %1247 = vmatpush.xpose.msra.mxu0 %v84
    %1248 = vmatpush.xpose.msra.mxu0 %v81
    %1249 = vmatpush.xpose.msra.mxu0 %v78
    %1250 = vmatpush.xpose.msra.mxu0 %v75
    %1251 = vmatmul.f32.gmra.mxu0 %v1233
    %v1252 = vpop.f32.mrf.mxu0
    %v1253 = vadd.f32 0.0, %v1252
    %1254 = vdwg.mxu0
    %1255 = vmatpush.xpose.msra.mxu0 %v168
    %1256 = vmatpush.xpose.msra.mxu0 %v165
    %1257 = vmatpush.xpose.msra.mxu0 %v162
    %1258 = vmatpush.xpose.msra.mxu0 %v159
    %1259 = vmatpush.xpose.msra.mxu0 %v156
    %1260 = vmatpush.xpose.msra.mxu0 %v153
    %1261 = vmatpush.xpose.msra.mxu0 %v150
    %1262 = vmatpush.xpose.msra.mxu0 %v147
    %1263 = vmatpush.xpose.msra.mxu0 %v144
    %1264 = vmatpush.xpose.msra.mxu0 %v141
    %1265 = vmatpush.xpose.msra.mxu0 %v138
    %1266 = vmatpush.xpose.msra.mxu0 %v135
    %1267 = vmatpush.xpose.msra.mxu0 %v132
    %1268 = vmatpush.xpose.msra.mxu0 %v129
    %1269 = vmatpush.xpose.msra.mxu0 %v126
    %1270 = vmatpush.xpose.msra.mxu0 %v123
    %1271 = vmatmul.f32.gmra.mxu0 %v1233
    %v1272 = vpop.f32.mrf.mxu0
    %v1273 = vadd.f32 0.0, %v1272
    %1274 = vdwg.mxu0
    %vm1275 = vcmp.ne.f32.partialorder %v1253, 0.0
    %vm1276 = vcmp.ne.f32.partialorder %v1273, 0.0
    %v1277 = vsel %vm1275, -7.5, %v1209
    %v1278 = vsel %vm1276, -7.5, %v1229
    %v1281 = vrot.slane %v1278, 7
    %vm1282 = vcmask 1040384
    %v1283 = vsel %vm1282, %v1277, %v1281
    %v1285 = vlaneseq
    %vm1286 = vcmp.ge.s32.totalorder %v1285, 0
    %vm1287 = vcmp.lt.s32.totalorder %v1285, 256
    %vm1288 = vmand %vm1286, %vm1287
    %1289 = vst.msk [vmem:[#allocation3] sm:$0x3] %vm1288, %v1283
    // Predicated region
    $region34: #{tpu_custom_call.1} parent=1 // pred_check
      _
    $region35: #{tpu_custom_call.1} parent=1 // pred_check_branch
      %1291 = sbr.rel (0) target = $region37
    $region36: #{tpu_custom_call.1} parent=1 // pred_region
      %1293 = vsyncadd [#allocation4], 0
      %s1295 = sshll.u32 [#allocation3], 4
      %s1296 = int_to_ptr.vmem [resolvable:$true] %s1295
      %s1297 = sshll.u32 %s8, 4
      %s1298 = int_to_ptr.hbm [resolvable:$true] %s1297
      %1300 = dma.vmem_to_hbm [thread:$0]  %s1296, 32, %s1298, [#allocation4]
    $region37: #{tpu_custom_call.1} parent=1 // pred_fallthru
      _
    // Predicated region
    $region38: #{tpu_custom_call.1} parent=1 // pred_check
      _
    $region39: #{tpu_custom_call.1} parent=1 // pred_check_branch
      %1302 = sbr.rel (0) target = $region41
    $region40: #{tpu_custom_call.1} parent=1 // pred_region
      %1304 = dma.done [#allocation4], 32
    $region41: #{tpu_custom_call.1} parent=1 // pred_fallthru
      _
    %1305 = vsyncpa [#allocation4], 1

</llo_original>
